<compile_context>
chip_gen: v5e
topology: v5e:2x2
jax: 0.10.0
libtpu: 0.0.40
codegen_flags: <defaults>
</compile_context>

<pallas_src>
import functools

import jax
import jax.numpy as jnp
from jax.experimental import pallas as pl
from jax.experimental.pallas import tpu as pltpu


def _round_up(x: int, m: int) -> int:
    return ((x + m - 1) // m) * m


# ---------------------------------------------------------------------------
# Fused kernel — single invocation, statically unrolled over k.
#   l_ref   : [N, N]        f32      Laplacian (VMEM resident)
#   x_ref   : [N, BCp]      f32      batch-folded features (zero-padded lanes)
#   w_ref   : [K, BCp, BWp] f32/bf16 batch-block-diagonal projection weights
#   bias_ref: [1, BWp]      f32      bias tiled per batch in the folded layout
#   out_ref : [N, BWp]      f32      folded, lane-dense output
# ---------------------------------------------------------------------------
def _chebconv_fused_kernel(l_ref, x_ref, w_ref, bias_ref, out_ref, *,
                           K, project_bf16):
    N = l_ref.shape[0]
    BWp = out_ref.shape[-1]

    L = l_ref[...]          # f32; the recurrence is kept in f32 on purpose
    x = x_ref[...]

    def proj(z, k):         # k is a Python int (unrolled) -> static index into resident W
        a = z.astype(jnp.bfloat16) if project_bf16 else z
        return jnp.dot(a, w_ref[k], preferred_element_type=jnp.float32)

    # Init the accumulator with the bias (hoisted single broadcast).
    acc = jnp.broadcast_to(bias_ref[...], (N, BWp))

    # ---- Chebyshev recurrence on the folded feature matrix, fully unrolled ----
    z_km1 = x                                                        # Z_0 = X   (T_0 = I)
    acc = acc + proj(z_km1, 0)
    if K > 1:
        z_k = jnp.dot(L, x, preferred_element_type=jnp.float32)      # Z_1 = L @ X
        acc = acc + proj(z_k, 1)
        z_km2, z_km1 = z_km1, z_k
        for k in range(2, K):                                        # static unroll
            z_k = 2.0 * jnp.dot(L, z_km1,
                                preferred_element_type=jnp.float32) - z_km2
            acc = acc + proj(z_k, k)
            z_km2, z_km1 = z_km1, z_k

    out_ref[...] = acc                                               # single lane-dense store


# ---------------------------------------------------------------------------
# Wrapper
# ---------------------------------------------------------------------------
@functools.partial(jax.jit, static_argnames=("use_bf16_mxu", "normalize"))
def chebconv_forward(inputs, graph, weight, bias=None, *,
                     use_bf16_mxu=False, normalize=False):
    """
    inputs : [B, N, C_in] f32
    graph  : [N, N]       f32 adjacency
    weight : [K, 1, C_in, C_out] f32  (K = cheb order + 1)
    bias   : [1, 1, C_out] f32 or None
    returns: [B, N, C_out] f32
    """
    B, N, Cin = inputs.shape
    K = weight.shape[0]
    Cout = weight.shape[-1]

    LANE = 128
    Cp = _round_up(Cout, LANE)          # lane-dense per-batch output width
    BCin = B * Cin                      # batch folded into lanes
    BCp = _round_up(BCin, LANE)         # padded folded feature width (matmul contraction)
    BWp = B * Cp                        # folded, lane-dense output width

    # Laplacian (tiny glue, plain JAX).
    graph = graph.astype(jnp.float32)
    if normalize:
        d = jnp.sum(graph, axis=-1) ** (-0.5)
        L = jnp.eye(N, dtype=jnp.float32) - (d[:, None] * graph) * d[None, :]
    else:
        L = jnp.diag(jnp.sum(graph, axis=-1)) - graph

    # Fold batch into lanes: [B,N,Cin] -> [N, B*Cin] -> pad to a 128-lane multiple.
    xf = jnp.transpose(inputs.astype(jnp.float32), (1, 0, 2)).reshape(N, BCin)
    xf = jnp.pad(xf, ((0, 0), (0, BCp - BCin)))

    # Batch-block-diagonal projection weights: W_bd[k, b*Cin+c, b*Cp+o] = W[k, c, o].
    # One well-shaped matmul per k (contraction = BCp) instead of B thin, unaligned ones.
    w = weight.reshape(K, Cin, Cout).astype(jnp.float32)
    w_bd = jnp.zeros((K, BCp, BWp), jnp.float32)
    for b in range(B):                              # B small & static, traced once
        w_bd = w_bd.at[:, b * Cin:(b + 1) * Cin, b * Cp:b * Cp + Cout].set(w)
    if use_bf16_mxu:
        w_bd = w_bd.astype(jnp.bfloat16)            # cast once in the wrapper

    # Bias tiled to the folded output layout [1, B*Cp].
    if bias is None:
        b_f = jnp.zeros((1, BWp), jnp.float32)
    else:
        b_pad = jnp.pad(bias.reshape(1, Cout).astype(jnp.float32),
                        ((0, 0), (0, Cp - Cout)))
        b_f = jnp.tile(b_pad, (1, B))

    # Explicit VMEM budget (resident operands + live Z/acc temporaries + headroom).
    wbytes = 2 if use_bf16_mxu else 4
    est = (N * N * 4                    # L
           + N * BCp * 4                # X folded
           + K * BCp * BWp * wbytes     # weights
           + BWp * 4                    # bias
           + N * BWp * 4                # output
           + 3 * N * BCp * 4            # Z_{k-2}, Z_{k-1}, Z_k
           + 2 * N * BWp * 4)           # accumulator + matmul result temp
    vmem_limit = int(min(max(est + (4 << 20), 32 << 20), 60 << 20))

    kernel = functools.partial(_chebconv_fused_kernel, K=K,
                               project_bf16=use_bf16_mxu)

    out_folded = pl.pallas_call(
        kernel,
        out_shape=jax.ShapeDtypeStruct((N, BWp), jnp.float32),
        in_specs=[
            pl.BlockSpec(memory_space=pltpu.MemorySpace.VMEM),   # L
            pl.BlockSpec(memory_space=pltpu.MemorySpace.VMEM),   # X folded
            pl.BlockSpec(memory_space=pltpu.MemorySpace.VMEM),   # W block-diag (all k)
            pl.BlockSpec(memory_space=pltpu.MemorySpace.VMEM),   # bias
        ],
        out_specs=pl.BlockSpec(memory_space=pltpu.MemorySpace.VMEM),
        compiler_params=pltpu.CompilerParams(vmem_limit_bytes=vmem_limit),
    )(L, xf, w_bd, b_f)

    # Unfold [N, B*Cp] -> [B, N, Cp] -> slice the lane padding off.
    out = jnp.transpose(out_folded.reshape(N, B, Cp), (1, 0, 2))
    return out[..., :Cout]


# ---------------------------------------------------------------------------
# Parameter init (deterministic, mirrors the module's __init__ shapes)
# ---------------------------------------------------------------------------
def init_chebconv_params(key, in_c, out_c, K_order, bias=True):
    K = K_order + 1
    k_w, k_mw = jax.random.split(key, 2)

    # xavier_normal_ on weight [K, 1, in_c, out_c]:
    rf = in_c * out_c
    std_w = (2.0 / (1 * rf + K * rf)) ** 0.5
    weight = std_w * jax.random.normal(k_w, (K, 1, in_c, out_c), dtype=jnp.float32)

    # Myweight_train [1, 128, in_c] — defined in __init__ but UNUSED in forward.
    std_mw = (2.0 / (128 + in_c)) ** 0.5
    myweight_train = std_mw * jax.random.normal(k_mw, (1, 128, in_c), dtype=jnp.float32)

    b = jnp.zeros((1, 1, out_c), dtype=jnp.float32) if bias else None
    return weight, b, myweight_train


# ---------------------------------------------------------------------------
if __name__ == "__main__":
    B, N, Cin, Cout, K_order = 2, 128, 16, 32, 3   # module's self.K = K_order + 1 = 4

    key = jax.random.PRNGKey(0)
    k_x, k_g, k_p, k_b = jax.random.split(key, 4)

    inputs = jax.random.normal(k_x, (B, N, Cin), dtype=jnp.float32)
    a = jax.random.uniform(k_g, (N, N), dtype=jnp.float32)
    graph = 0.5 * (a + a.T)                        # symmetric non-negative adjacency

    weight, bias, _myw = init_chebconv_params(k_p, Cin, Cout, K_order, bias=True)
    # non-zero bias so the bias path is actually exercised (module inits it to zeros)
    bias = 0.1 * jax.random.normal(k_b, (1, 1, Cout), dtype=jnp.float32)

    out = chebconv_forward(inputs, graph, weight, bias)
    out = jax.block_until_ready(out)

    # pure-JAX reference (mirrors the PyTorch forward exactly)
    L = jnp.diag(jnp.sum(graph, axis=-1)) - graph
    K = K_order + 1
    polys = [jnp.eye(N, dtype=jnp.float32), L]
    for k in range(2, K):
        polys.append(2.0 * (L @ polys[k - 1]) - polys[k - 2])
    mul_L = jnp.stack(polys[:K], axis=0)                                  # [K,N,N]
    r1 = jnp.einsum('knm,bmc->kbnc', mul_L, inputs)                       # [K,B,N,Cin]
    r2 = jnp.einsum('kbnc,kco->kbno', r1, weight.reshape(K, Cin, Cout))   # [K,B,N,Cout]
    ref = jnp.sum(r2, axis=0) + bias.reshape(1, 1, Cout)                  # [B,N,Cout]

    assert out.shape == (B, N, Cout), out.shape
    err = float(jnp.max(jnp.abs(out - ref)))
    tol = 1e-3 * (float(jnp.max(jnp.abs(ref))) + 1.0)   # scale-aware f32 tolerance
    assert err <= tol, (err, tol)

    print("KERNEL_OK")
</pallas_src>

<mosaic_0001>
module attributes {stable_mosaic.version = 11 : i64} {
  func.func @_chebconv_fused_kernel(%arg0: memref<128x128xf32, #tpu.memory_space<vmem>>, %arg1: memref<128x128xf32, #tpu.memory_space<vmem>>, %arg2: memref<4x128x256xf32, #tpu.memory_space<vmem>>, %arg3: memref<1x256xf32, #tpu.memory_space<vmem>>, %arg4: memref<128x256xf32, #tpu.memory_space<vmem>>) attributes {dimension_semantics = [], scalar_prefetch = 0 : i64, scratch_operands = 0 : i64, tpu.core_type = #tpu.core_type<tc>} {
    %c0 = arith.constant 0 : index
    %c0_0 = arith.constant 0 : index
    %0 = vector.load %arg0[%c0, %c0_0] : memref<128x128xf32, #tpu.memory_space<vmem>>, vector<128x128xf32>
    %c0_1 = arith.constant 0 : index
    %c0_2 = arith.constant 0 : index
    %1 = vector.load %arg1[%c0_1, %c0_2] : memref<128x128xf32, #tpu.memory_space<vmem>>, vector<128x128xf32>
    %c0_3 = arith.constant 0 : index
    %c0_4 = arith.constant 0 : index
    %2 = vector.load %arg3[%c0_3, %c0_4] : memref<1x256xf32, #tpu.memory_space<vmem>>, vector<1x256xf32>
    %3 = vector.shape_cast %2 : vector<1x256xf32> to vector<1x256xf32>
    %4 = vector.broadcast %3 : vector<1x256xf32> to vector<128x256xf32>
    %c0_5 = arith.constant 0 : index
    %c0_6 = arith.constant 0 : index
    %c0_7 = arith.constant 0 : index
    %5 = vector.load %arg2[%c0_5, %c0_6, %c0_7] : memref<4x128x256xf32, #tpu.memory_space<vmem>>, vector<1x128x256xf32>
    %6 = vector.shape_cast %5 : vector<1x128x256xf32> to vector<128x256xf32>
    %cst = arith.constant dense<0.000000e+00> : vector<128x256xf32>
    %7 = tpu.matmul %1, %6, %cst {dimension_numbers = #tpu.dot_dimension_numbers<[1], [0], [0], [1], [0, 0, 1, 1], [], []>} : vector<128x128xf32>, vector<128x256xf32>, vector<128x256xf32> -> vector<128x256xf32>
    %8 = arith.addf %4, %7 : vector<128x256xf32>
    %cst_8 = arith.constant dense<0.000000e+00> : vector<128x128xf32>
    %9 = tpu.matmul %0, %1, %cst_8 {dimension_numbers = #tpu.dot_dimension_numbers<[1], [0], [0], [1], [0, 0, 1, 1], [], []>} : vector<128x128xf32>, vector<128x128xf32>, vector<128x128xf32> -> vector<128x128xf32>
    %c1 = arith.constant 1 : index
    %c0_9 = arith.constant 0 : index
    %c0_10 = arith.constant 0 : index
    %10 = vector.load %arg2[%c1, %c0_9, %c0_10] : memref<4x128x256xf32, #tpu.memory_space<vmem>>, vector<1x128x256xf32>
    %11 = vector.shape_cast %10 : vector<1x128x256xf32> to vector<128x256xf32>
    %cst_11 = arith.constant dense<0.000000e+00> : vector<128x256xf32>
    %12 = tpu.matmul %9, %11, %cst_11 {dimension_numbers = #tpu.dot_dimension_numbers<[1], [0], [0], [1], [0, 0, 1, 1], [], []>} : vector<128x128xf32>, vector<128x256xf32>, vector<128x256xf32> -> vector<128x256xf32>
    %13 = arith.addf %8, %12 : vector<128x256xf32>
    %cst_12 = arith.constant dense<0.000000e+00> : vector<128x128xf32>
    %14 = tpu.matmul %0, %9, %cst_12 {dimension_numbers = #tpu.dot_dimension_numbers<[1], [0], [0], [1], [0, 0, 1, 1], [], []>} : vector<128x128xf32>, vector<128x128xf32>, vector<128x128xf32> -> vector<128x128xf32>
    %cst_13 = arith.constant 2.000000e+00 : f32
    %15 = vector.broadcast %cst_13 : f32 to vector<128x128xf32>
    %16 = arith.mulf %15, %14 : vector<128x128xf32>
    %17 = arith.subf %16, %1 : vector<128x128xf32>
    %c2 = arith.constant 2 : index
    %c0_14 = arith.constant 0 : index
    %c0_15 = arith.constant 0 : index
    %18 = vector.load %arg2[%c2, %c0_14, %c0_15] : memref<4x128x256xf32, #tpu.memory_space<vmem>>, vector<1x128x256xf32>
    %19 = vector.shape_cast %18 : vector<1x128x256xf32> to vector<128x256xf32>
    %cst_16 = arith.constant dense<0.000000e+00> : vector<128x256xf32>
    %20 = tpu.matmul %17, %19, %cst_16 {dimension_numbers = #tpu.dot_dimension_numbers<[1], [0], [0], [1], [0, 0, 1, 1], [], []>} : vector<128x128xf32>, vector<128x256xf32>, vector<128x256xf32> -> vector<128x256xf32>
    %21 = arith.addf %13, %20 : vector<128x256xf32>
    %cst_17 = arith.constant dense<0.000000e+00> : vector<128x128xf32>
    %22 = tpu.matmul %0, %17, %cst_17 {dimension_numbers = #tpu.dot_dimension_numbers<[1], [0], [0], [1], [0, 0, 1, 1], [], []>} : vector<128x128xf32>, vector<128x128xf32>, vector<128x128xf32> -> vector<128x128xf32>
    %cst_18 = arith.constant 2.000000e+00 : f32
    %23 = vector.broadcast %cst_18 : f32 to vector<128x128xf32>
    %24 = arith.mulf %23, %22 : vector<128x128xf32>
    %25 = arith.subf %24, %9 : vector<128x128xf32>
    %c3 = arith.constant 3 : index
    %c0_19 = arith.constant 0 : index
    %c0_20 = arith.constant 0 : index
    %26 = vector.load %arg2[%c3, %c0_19, %c0_20] : memref<4x128x256xf32, #tpu.memory_space<vmem>>, vector<1x128x256xf32>
    %27 = vector.shape_cast %26 : vector<1x128x256xf32> to vector<128x256xf32>
    %cst_21 = arith.constant dense<0.000000e+00> : vector<128x256xf32>
    %28 = tpu.matmul %25, %27, %cst_21 {dimension_numbers = #tpu.dot_dimension_numbers<[1], [0], [0], [1], [0, 0, 1, 1], [], []>} : vector<128x128xf32>, vector<128x256xf32>, vector<128x256xf32> -> vector<128x256xf32>
    %29 = arith.addf %21, %28 : vector<128x256xf32>
    %c0_22 = arith.constant 0 : index
    %c0_23 = arith.constant 0 : index
    %30 = vector.load %arg4[%c0_22, %c0_23] : memref<128x256xf32, #tpu.memory_space<vmem>>, vector<128x256xf32>
    tpu.vector_store %arg4[%c0_22, %c0_23], %29 {strides = array<i32>} : memref<128x256xf32, #tpu.memory_space<vmem>>, vector<128x256xf32>,
    return
  }
}

</mosaic_0001>

<llo_original>
// kernel: chebconv_forward.1
$region0: #{chebconv_forward.1}
  #allocation0 [shape = 'u32[]', space=smem, size = 0x4, offset = 0x4, fixed_abs, tag = 'smem constant byte address 0x4 - core index']
  #allocation1 [shape = 'u32[72,128]{1,0:T(1,128)}', space=vmem, size = 0x9000, scoped, tag = 'internal scratch']
  %s0 = inlined_call_operand.vmem [shape: f32[128,128], index: 0, kind: input, shape index: {}]
  %s1 = inlined_call_operand.vmem [shape: f32[128,128], index: 1, kind: input, shape index: {}]
  %s2 = inlined_call_operand.vmem [shape: f32[4,128,256], index: 2, kind: input, shape index: {}]
  %s3 = inlined_call_operand.vmem [shape: f32[1,256], index: 3, kind: input, shape index: {}]
  %s4 = inlined_call_operand.vmem [shape: f32[128,256], index: 4, kind: output, shape index: {}]
  %s5 = sld [smem:[#allocation0]]
  $region26: #{chebconv_forward.1} parent=0
    _
  %s7 = ssub.s32 1, %s5
  %s8 = scalar_select 0, %s7, %s5
  // Predicated region
  $region2: #{chebconv_forward.1} parent=0 // pred_check
    _
  $region3: #{chebconv_forward.1} parent=0 // pred_check_branch
    %10 = sbr.rel (0) target = $region5
  $region4: #{chebconv_forward.1} parent=0 // pred_region
    _
  $region5: #{chebconv_forward.1} parent=0 // pred_fallthru
    _
  // Predicated region
  $region6: #{chebconv_forward.1} parent=0 // pred_check
    _
  $region7: #{chebconv_forward.1} parent=0 // pred_check_branch
    %12 = sbr.rel (0) target = $region9
  $region8: #{chebconv_forward.1} parent=0 // pred_region
    _
  $region9: #{chebconv_forward.1} parent=0 // pred_fallthru
    _
  // Predicated region
  $region10: #{chebconv_forward.1} parent=0 // pred_check
    _
  $region11: #{chebconv_forward.1} parent=0 // pred_check_branch
    %14 = sbr.rel (0) target = $region13
  $region12: #{chebconv_forward.1} parent=0 // pred_region
    _
  $region13: #{chebconv_forward.1} parent=0 // pred_fallthru
    _
  // Predicated region
  $region14: #{chebconv_forward.1} parent=0 // pred_check
    _
  $region15: #{chebconv_forward.1} parent=0 // pred_check_branch
    %16 = sbr.rel (0) target = $region17
  $region16: #{chebconv_forward.1} parent=0 // pred_region
    _
  $region17: #{chebconv_forward.1} parent=0 // pred_fallthru
    _
  %v17 = vld [vmem:[%s0] sm:$0xff]
  %v18 = vld [vmem:[%s0 + $0x8] sm:$0xff]
  %v19 = vld [vmem:[%s0 + $0x10] sm:$0xff]
  %v20 = vld [vmem:[%s0 + $0x18] sm:$0xff]
  %v21 = vld [vmem:[%s0 + $0x20] sm:$0xff]
  %v22 = vld [vmem:[%s0 + $0x28] sm:$0xff]
  %v23 = vld [vmem:[%s0 + $0x30] sm:$0xff]
  %v24 = vld [vmem:[%s0 + $0x38] sm:$0xff]
  %v25 = vld [vmem:[%s0 + $0x40] sm:$0xff]
  %v26 = vld [vmem:[%s0 + $0x48] sm:$0xff]
  %v27 = vld [vmem:[%s0 + $0x50] sm:$0xff]
  %v28 = vld [vmem:[%s0 + $0x58] sm:$0xff]
  %v29 = vld [vmem:[%s0 + $0x60] sm:$0xff]
  %v30 = vld [vmem:[%s0 + $0x68] sm:$0xff]
  %v31 = vld [vmem:[%s0 + $0x70] sm:$0xff]
  %v32 = vld [vmem:[%s0 + $0x78] sm:$0xff]
  %v33 = vld [vmem:[%s1] sm:$0xff]
  %v34 = vld [vmem:[%s1 + $0x8] sm:$0xff]
  %v35 = vld [vmem:[%s1 + $0x10] sm:$0xff]
  %v36 = vld [vmem:[%s1 + $0x18] sm:$0xff]
  %v37 = vld [vmem:[%s1 + $0x20] sm:$0xff]
  %v38 = vld [vmem:[%s1 + $0x28] sm:$0xff]
  %v39 = vld [vmem:[%s1 + $0x30] sm:$0xff]
  %v40 = vld [vmem:[%s1 + $0x38] sm:$0xff]
  %v41 = vld [vmem:[%s1 + $0x40] sm:$0xff]
  %v42 = vld [vmem:[%s1 + $0x48] sm:$0xff]
  %v43 = vld [vmem:[%s1 + $0x50] sm:$0xff]
  %v44 = vld [vmem:[%s1 + $0x58] sm:$0xff]
  %v45 = vld [vmem:[%s1 + $0x60] sm:$0xff]
  %v46 = vld [vmem:[%s1 + $0x68] sm:$0xff]
  %v47 = vld [vmem:[%s1 + $0x70] sm:$0xff]
  %v48 = vld [vmem:[%s1 + $0x78] sm:$0xff]
  %v49 = vld [vmem:[%s3] sm:$0x3]
  %v51 = vperm.slane %v49, 0
  %v52 = vperm.slane %v49, 1
  %v55 = vld [vmem:[%s2] sm:$0xff]
  %v56 = vld [vmem:[%s2 + $0x8] sm:$0xff]
  %v57 = vld [vmem:[%s2 + $0x10] sm:$0xff]
  %v58 = vld [vmem:[%s2 + $0x18] sm:$0xff]
  %v59 = vld [vmem:[%s2 + $0x20] sm:$0xff]
  %v60 = vld [vmem:[%s2 + $0x28] sm:$0xff]
  %v61 = vld [vmem:[%s2 + $0x30] sm:$0xff]
  %v62 = vld [vmem:[%s2 + $0x38] sm:$0xff]
  %v63 = vld [vmem:[%s2 + $0x40] sm:$0xff]
  %v64 = vld [vmem:[%s2 + $0x48] sm:$0xff]
  %v65 = vld [vmem:[%s2 + $0x50] sm:$0xff]
  %v66 = vld [vmem:[%s2 + $0x58] sm:$0xff]
  %v67 = vld [vmem:[%s2 + $0x60] sm:$0xff]
  %v68 = vld [vmem:[%s2 + $0x68] sm:$0xff]
  %v69 = vld [vmem:[%s2 + $0x70] sm:$0xff]
  %v70 = vld [vmem:[%s2 + $0x78] sm:$0xff]
  %v71 = vld [vmem:[%s2 + $0x80] sm:$0xff]
  %v72 = vld [vmem:[%s2 + $0x88] sm:$0xff]
  %v73 = vld [vmem:[%s2 + $0x90] sm:$0xff]
  %v74 = vld [vmem:[%s2 + $0x98] sm:$0xff]
  %v75 = vld [vmem:[%s2 + $0xa0] sm:$0xff]
  %v76 = vld [vmem:[%s2 + $0xa8] sm:$0xff]
  %v77 = vld [vmem:[%s2 + $0xb0] sm:$0xff]
  %v78 = vld [vmem:[%s2 + $0xb8] sm:$0xff]
  %v79 = vld [vmem:[%s2 + $0xc0] sm:$0xff]
  %v80 = vld [vmem:[%s2 + $0xc8] sm:$0xff]
  %v81 = vld [vmem:[%s2 + $0xd0] sm:$0xff]
  %v82 = vld [vmem:[%s2 + $0xd8] sm:$0xff]
  %v83 = vld [vmem:[%s2 + $0xe0] sm:$0xff]
  %v84 = vld [vmem:[%s2 + $0xe8] sm:$0xff]
  %v85 = vld [vmem:[%s2 + $0xf0] sm:$0xff]
  %v86 = vld [vmem:[%s2 + $0xf8] sm:$0xff]
  %87 = vmatpush.msra.mxu0 %v85
  %88 = vmatpush.msra.mxu0 %v83
  %89 = vmatpush.msra.mxu0 %v81
  %90 = vmatpush.msra.mxu0 %v79
  %91 = vmatpush.msra.mxu0 %v77
  %92 = vmatpush.msra.mxu0 %v75
  %93 = vmatpush.msra.mxu0 %v73
  %94 = vmatpush.msra.mxu0 %v71
  %95 = vmatpush.msra.mxu0 %v69
  %96 = vmatpush.msra.mxu0 %v67
  %97 = vmatpush.msra.mxu0 %v65
  %98 = vmatpush.msra.mxu0 %v63
  %99 = vmatpush.msra.mxu0 %v61
  %100 = vmatpush.msra.mxu0 %v59
  %101 = vmatpush.msra.mxu0 %v57
  %102 = vmatpush.msra.mxu0 %v55
  %103 = vmatmul.f32.gmra.mxu0 %v33
  %v104 = vpop.f32.mrf.mxu0
  %v105 = vadd.f32 0.0, %v104
  %106 = vmatmul.f32.gmra.mxu0 %v34
  %v107 = vpop.f32.mrf.mxu0
  %v108 = vadd.f32 0.0, %v107
  %109 = vmatmul.f32.gmra.mxu0 %v35
  %v110 = vpop.f32.mrf.mxu0
  %v111 = vadd.f32 0.0, %v110
  %112 = vmatmul.f32.gmra.mxu0 %v36
  %v113 = vpop.f32.mrf.mxu0
  %v114 = vadd.f32 0.0, %v113
  %115 = vmatmul.f32.gmra.mxu0 %v37
  %v116 = vpop.f32.mrf.mxu0
  %v117 = vadd.f32 0.0, %v116
  %118 = vmatmul.f32.gmra.mxu0 %v38
  %v119 = vpop.f32.mrf.mxu0
  %v120 = vadd.f32 0.0, %v119
  %121 = vmatmul.f32.gmra.mxu0 %v39
  %v122 = vpop.f32.mrf.mxu0
  %v123 = vadd.f32 0.0, %v122
  %124 = vmatmul.f32.gmra.mxu0 %v40
  %v125 = vpop.f32.mrf.mxu0
  %v126 = vadd.f32 0.0, %v125
  %127 = vmatmul.f32.gmra.mxu0 %v41
  %v128 = vpop.f32.mrf.mxu0
  %v129 = vadd.f32 0.0, %v128
  %130 = vmatmul.f32.gmra.mxu0 %v42
  %v131 = vpop.f32.mrf.mxu0
  %v132 = vadd.f32 0.0, %v131
  %133 = vmatmul.f32.gmra.mxu0 %v43
  %v134 = vpop.f32.mrf.mxu0
  %v135 = vadd.f32 0.0, %v134
  %136 = vmatmul.f32.gmra.mxu0 %v44
  %v137 = vpop.f32.mrf.mxu0
  %v138 = vadd.f32 0.0, %v137
  %139 = vmatmul.f32.gmra.mxu0 %v45
  %v140 = vpop.f32.mrf.mxu0
  %v141 = vadd.f32 0.0, %v140
  %142 = vmatmul.f32.gmra.mxu0 %v46
  %v143 = vpop.f32.mrf.mxu0
  %v144 = vadd.f32 0.0, %v143
  %145 = vmatmul.f32.gmra.mxu0 %v47
  %v146 = vpop.f32.mrf.mxu0
  %v147 = vadd.f32 0.0, %v146
  %148 = vmatmul.f32.gmra.mxu0 %v48
  %v149 = vpop.f32.mrf.mxu0
  %v150 = vadd.f32 0.0, %v149
  %151 = vdwg.mxu0
  %152 = vmatpush.msra.mxu0 %v86
  %153 = vmatpush.msra.mxu0 %v84
  %154 = vmatpush.msra.mxu0 %v82
  %155 = vmatpush.msra.mxu0 %v80
  %156 = vmatpush.msra.mxu0 %v78
  %157 = vmatpush.msra.mxu0 %v76
  %158 = vmatpush.msra.mxu0 %v74
  %159 = vmatpush.msra.mxu0 %v72
  %160 = vmatpush.msra.mxu0 %v70
  %161 = vmatpush.msra.mxu0 %v68
  %162 = vmatpush.msra.mxu0 %v66
  %163 = vmatpush.msra.mxu0 %v64
  %164 = vmatpush.msra.mxu0 %v62
  %165 = vmatpush.msra.mxu0 %v60
  %166 = vmatpush.msra.mxu0 %v58
  %167 = vmatpush.msra.mxu0 %v56
  %168 = vmatmul.f32.gmra.mxu0 %v33
  %v169 = vpop.f32.mrf.mxu0
  %v170 = vadd.f32 0.0, %v169
  %171 = vmatmul.f32.gmra.mxu0 %v34
  %v172 = vpop.f32.mrf.mxu0
  %v173 = vadd.f32 0.0, %v172
  %174 = vmatmul.f32.gmra.mxu0 %v35
  %v175 = vpop.f32.mrf.mxu0
  %v176 = vadd.f32 0.0, %v175
  %177 = vmatmul.f32.gmra.mxu0 %v36
  %v178 = vpop.f32.mrf.mxu0
  %v179 = vadd.f32 0.0, %v178
  %180 = vmatmul.f32.gmra.mxu0 %v37
  %v181 = vpop.f32.mrf.mxu0
  %v182 = vadd.f32 0.0, %v181
  %183 = vmatmul.f32.gmra.mxu0 %v38
  %v184 = vpop.f32.mrf.mxu0
  %v185 = vadd.f32 0.0, %v184
  %186 = vmatmul.f32.gmra.mxu0 %v39
  %v187 = vpop.f32.mrf.mxu0
  %v188 = vadd.f32 0.0, %v187
  %189 = vmatmul.f32.gmra.mxu0 %v40
  %v190 = vpop.f32.mrf.mxu0
  %v191 = vadd.f32 0.0, %v190
  %192 = vmatmul.f32.gmra.mxu0 %v41
  %v193 = vpop.f32.mrf.mxu0
  %v194 = vadd.f32 0.0, %v193
  %195 = vmatmul.f32.gmra.mxu0 %v42
  %v196 = vpop.f32.mrf.mxu0
  %v197 = vadd.f32 0.0, %v196
  %198 = vmatmul.f32.gmra.mxu0 %v43
  %v199 = vpop.f32.mrf.mxu0
  %v200 = vadd.f32 0.0, %v199
  %201 = vmatmul.f32.gmra.mxu0 %v44
  %v202 = vpop.f32.mrf.mxu0
  %v203 = vadd.f32 0.0, %v202
  %204 = vmatmul.f32.gmra.mxu0 %v45
  %v205 = vpop.f32.mrf.mxu0
  %v206 = vadd.f32 0.0, %v205
  %207 = vmatmul.f32.gmra.mxu0 %v46
  %v208 = vpop.f32.mrf.mxu0
  %v209 = vadd.f32 0.0, %v208
  %210 = vmatmul.f32.gmra.mxu0 %v47
  %v211 = vpop.f32.mrf.mxu0
  %v212 = vadd.f32 0.0, %v211
  %213 = vmatmul.f32.gmra.mxu0 %v48
  %v214 = vpop.f32.mrf.mxu0
  %v215 = vadd.f32 0.0, %v214
  %216 = vdwg.mxu0
  %v217 = vadd.f32 %v51, %v105
  %v218 = vadd.f32 %v52, %v170
  %v219 = vadd.f32 %v51, %v108
  %v220 = vadd.f32 %v52, %v173
  %v221 = vadd.f32 %v51, %v111
  %v222 = vadd.f32 %v52, %v176
  %v223 = vadd.f32 %v51, %v114
  %v224 = vadd.f32 %v52, %v179
  %v225 = vadd.f32 %v51, %v117
  %v226 = vadd.f32 %v52, %v182
  %v227 = vadd.f32 %v51, %v120
  %v228 = vadd.f32 %v52, %v185
  %v229 = vadd.f32 %v51, %v123
  %v230 = vadd.f32 %v52, %v188
  %v231 = vadd.f32 %v51, %v126
  %v232 = vadd.f32 %v52, %v191
  %v233 = vadd.f32 %v51, %v129
  %v234 = vadd.f32 %v52, %v194
  %v235 = vadd.f32 %v51, %v132
  %v236 = vadd.f32 %v52, %v197
  %v237 = vadd.f32 %v51, %v135
  %v238 = vadd.f32 %v52, %v200
  %v239 = vadd.f32 %v51, %v138
  %v240 = vadd.f32 %v52, %v203
  %v241 = vadd.f32 %v51, %v141
  %v242 = vadd.f32 %v52, %v206
  %v243 = vadd.f32 %v51, %v144
  %v244 = vadd.f32 %v52, %v209
  %v245 = vadd.f32 %v51, %v147
  %v246 = vadd.f32 %v52, %v212
  %v247 = vadd.f32 %v51, %v150
  %v248 = vadd.f32 %v52, %v215
  %249 = vmatpush.msra.mxu0 %v48
  %250 = vmatpush.msra.mxu0 %v47
  %251 = vmatpush.msra.mxu0 %v46
  %252 = vmatpush.msra.mxu0 %v45
  %253 = vmatpush.msra.mxu0 %v44
  %254 = vmatpush.msra.mxu0 %v43
  %255 = vmatpush.msra.mxu0 %v42
  %256 = vmatpush.msra.mxu0 %v41
  %257 = vmatpush.msra.mxu0 %v40
  %258 = vmatpush.msra.mxu0 %v39
  %259 = vmatpush.msra.mxu0 %v38
  %260 = vmatpush.msra.mxu0 %v37
  %261 = vmatpush.msra.mxu0 %v36
  %262 = vmatpush.msra.mxu0 %v35
  %263 = vmatpush.msra.mxu0 %v34
  %264 = vmatpush.msra.mxu0 %v33
  %265 = vmatmul.f32.gmra.mxu0 %v17
  %v266 = vpop.f32.mrf.mxu0
  %v267 = vadd.f32 0.0, %v266
  %268 = vmatmul.f32.gmra.mxu0 %v18
  %v269 = vpop.f32.mrf.mxu0
  %v270 = vadd.f32 0.0, %v269
  %271 = vmatmul.f32.gmra.mxu0 %v19
  %v272 = vpop.f32.mrf.mxu0
  %v273 = vadd.f32 0.0, %v272
  %274 = vmatmul.f32.gmra.mxu0 %v20
  %v275 = vpop.f32.mrf.mxu0
  %v276 = vadd.f32 0.0, %v275
  %277 = vmatmul.f32.gmra.mxu0 %v21
  %v278 = vpop.f32.mrf.mxu0
  %v279 = vadd.f32 0.0, %v278
  %280 = vmatmul.f32.gmra.mxu0 %v22
  %v281 = vpop.f32.mrf.mxu0
  %v282 = vadd.f32 0.0, %v281
  %283 = vmatmul.f32.gmra.mxu0 %v23
  %v284 = vpop.f32.mrf.mxu0
  %v285 = vadd.f32 0.0, %v284
  %286 = vmatmul.f32.gmra.mxu0 %v24
  %v287 = vpop.f32.mrf.mxu0
  %v288 = vadd.f32 0.0, %v287
  %289 = vmatmul.f32.gmra.mxu0 %v25
  %v290 = vpop.f32.mrf.mxu0
  %v291 = vadd.f32 0.0, %v290
  %292 = vmatmul.f32.gmra.mxu0 %v26
  %v293 = vpop.f32.mrf.mxu0
  %v294 = vadd.f32 0.0, %v293
  %295 = vmatmul.f32.gmra.mxu0 %v27
  %v296 = vpop.f32.mrf.mxu0
  %v297 = vadd.f32 0.0, %v296
  %298 = vmatmul.f32.gmra.mxu0 %v28
  %v299 = vpop.f32.mrf.mxu0
  %v300 = vadd.f32 0.0, %v299
  %301 = vmatmul.f32.gmra.mxu0 %v29
  %v302 = vpop.f32.mrf.mxu0
  %v303 = vadd.f32 0.0, %v302
  %304 = vmatmul.f32.gmra.mxu0 %v30
  %v305 = vpop.f32.mrf.mxu0
  %v306 = vadd.f32 0.0, %v305
  %307 = vmatmul.f32.gmra.mxu0 %v31
  %v308 = vpop.f32.mrf.mxu0
  %v309 = vadd.f32 0.0, %v308
  %310 = vmatmul.f32.gmra.mxu0 %v32
  %v311 = vpop.f32.mrf.mxu0
  %v312 = vadd.f32 0.0, %v311
  %313 = vdwg.mxu0
  %s314 = scalar_lea.vmem %s2, 256
  %v315 = vld [vmem:[%s314] sm:$0xff]
  %v316 = vld [vmem:[%s314 + $0x8] sm:$0xff]
  %v317 = vld [vmem:[%s314 + $0x10] sm:$0xff]
  %v318 = vld [vmem:[%s314 + $0x18] sm:$0xff]
  %v319 = vld [vmem:[%s314 + $0x20] sm:$0xff]
  %v320 = vld [vmem:[%s314 + $0x28] sm:$0xff]
  %v321 = vld [vmem:[%s314 + $0x30] sm:$0xff]
  %v322 = vld [vmem:[%s314 + $0x38] sm:$0xff]
  %v323 = vld [vmem:[%s314 + $0x40] sm:$0xff]
  %v324 = vld [vmem:[%s314 + $0x48] sm:$0xff]
  %v325 = vld [vmem:[%s314 + $0x50] sm:$0xff]
  %v326 = vld [vmem:[%s314 + $0x58] sm:$0xff]
  %v327 = vld [vmem:[%s314 + $0x60] sm:$0xff]
  %v328 = vld [vmem:[%s314 + $0x68] sm:$0xff]
  %v329 = vld [vmem:[%s314 + $0x70] sm:$0xff]
  %v330 = vld [vmem:[%s314 + $0x78] sm:$0xff]
  %v331 = vld [vmem:[%s314 + $0x80] sm:$0xff]
  %v332 = vld [vmem:[%s314 + $0x88] sm:$0xff]
  %v333 = vld [vmem:[%s314 + $0x90] sm:$0xff]
  %v334 = vld [vmem:[%s314 + $0x98] sm:$0xff]
  %v335 = vld [vmem:[%s314 + $0xa0] sm:$0xff]
  %v336 = vld [vmem:[%s314 + $0xa8] sm:$0xff]
  %v337 = vld [vmem:[%s314 + $0xb0] sm:$0xff]
  %v338 = vld [vmem:[%s314 + $0xb8] sm:$0xff]
  %v339 = vld [vmem:[%s314 + $0xc0] sm:$0xff]
  %v340 = vld [vmem:[%s314 + $0xc8] sm:$0xff]
  %v341 = vld [vmem:[%s314 + $0xd0] sm:$0xff]
  %v342 = vld [vmem:[%s314 + $0xd8] sm:$0xff]
  %v343 = vld [vmem:[%s314 + $0xe0] sm:$0xff]
  %v344 = vld [vmem:[%s314 + $0xe8] sm:$0xff]
  %v345 = vld [vmem:[%s314 + $0xf0] sm:$0xff]
  %v346 = vld [vmem:[%s314 + $0xf8] sm:$0xff]
  %347 = vmatpush.msra.mxu0 %v345
  %348 = vmatpush.msra.mxu0 %v343
  %349 = vmatpush.msra.mxu0 %v341
  %350 = vmatpush.msra.mxu0 %v339
  %351 = vmatpush.msra.mxu0 %v337
  %352 = vmatpush.msra.mxu0 %v335
  %353 = vmatpush.msra.mxu0 %v333
  %354 = vmatpush.msra.mxu0 %v331
  %355 = vmatpush.msra.mxu0 %v329
  %356 = vmatpush.msra.mxu0 %v327
  %357 = vmatpush.msra.mxu0 %v325
  %358 = vmatpush.msra.mxu0 %v323
  %359 = vmatpush.msra.mxu0 %v321
  %360 = vmatpush.msra.mxu0 %v319
  %361 = vmatpush.msra.mxu0 %v317
  %362 = vmatpush.msra.mxu0 %v315
  %363 = vmatmul.f32.gmra.mxu0 %v267
  %v364 = vpop.f32.mrf.mxu0
  %v365 = vadd.f32 0.0, %v364
  %366 = vmatmul.f32.gmra.mxu0 %v270
  %v367 = vpop.f32.mrf.mxu0
  %v368 = vadd.f32 0.0, %v367
  %369 = vmatmul.f32.gmra.mxu0 %v273
  %v370 = vpop.f32.mrf.mxu0
  %v371 = vadd.f32 0.0, %v370
  %372 = vmatmul.f32.gmra.mxu0 %v276
  %v373 = vpop.f32.mrf.mxu0
  %v374 = vadd.f32 0.0, %v373
  %375 = vmatmul.f32.gmra.mxu0 %v279
  %v376 = vpop.f32.mrf.mxu0
  %v377 = vadd.f32 0.0, %v376
  %378 = vmatmul.f32.gmra.mxu0 %v282
  %v379 = vpop.f32.mrf.mxu0
  %v380 = vadd.f32 0.0, %v379
  %381 = vmatmul.f32.gmra.mxu0 %v285
  %v382 = vpop.f32.mrf.mxu0
  %v383 = vadd.f32 0.0, %v382
  %384 = vmatmul.f32.gmra.mxu0 %v288
  %v385 = vpop.f32.mrf.mxu0
  %v386 = vadd.f32 0.0, %v385
  %387 = vmatmul.f32.gmra.mxu0 %v291
  %v388 = vpop.f32.mrf.mxu0
  %v389 = vadd.f32 0.0, %v388
  %390 = vmatmul.f32.gmra.mxu0 %v294
  %v391 = vpop.f32.mrf.mxu0
  %v392 = vadd.f32 0.0, %v391
  %393 = vmatmul.f32.gmra.mxu0 %v297
  %v394 = vpop.f32.mrf.mxu0
  %v395 = vadd.f32 0.0, %v394
  %396 = vmatmul.f32.gmra.mxu0 %v300
  %v397 = vpop.f32.mrf.mxu0
  %v398 = vadd.f32 0.0, %v397
  %399 = vmatmul.f32.gmra.mxu0 %v303
  %v400 = vpop.f32.mrf.mxu0
  %v401 = vadd.f32 0.0, %v400
  %402 = vmatmul.f32.gmra.mxu0 %v306
  %v403 = vpop.f32.mrf.mxu0
  %v404 = vadd.f32 0.0, %v403
  %405 = vmatmul.f32.gmra.mxu0 %v309
  %v406 = vpop.f32.mrf.mxu0
  %v407 = vadd.f32 0.0, %v406
  %408 = vmatmul.f32.gmra.mxu0 %v312
  %v409 = vpop.f32.mrf.mxu0
  %v410 = vadd.f32 0.0, %v409
  %411 = vdwg.mxu0
  %412 = vmatpush.msra.mxu0 %v346
  %413 = vmatpush.msra.mxu0 %v344
  %414 = vmatpush.msra.mxu0 %v342
  %415 = vmatpush.msra.mxu0 %v340
  %416 = vmatpush.msra.mxu0 %v338
  %417 = vmatpush.msra.mxu0 %v336
  %418 = vmatpush.msra.mxu0 %v334
  %419 = vmatpush.msra.mxu0 %v332
  %420 = vmatpush.msra.mxu0 %v330
  %421 = vmatpush.msra.mxu0 %v328
  %422 = vmatpush.msra.mxu0 %v326
  %423 = vmatpush.msra.mxu0 %v324
  %424 = vmatpush.msra.mxu0 %v322
  %425 = vmatpush.msra.mxu0 %v320
  %426 = vmatpush.msra.mxu0 %v318
  %427 = vmatpush.msra.mxu0 %v316
  %428 = vmatmul.f32.gmra.mxu0 %v267
  %v429 = vpop.f32.mrf.mxu0
  %v430 = vadd.f32 0.0, %v429
  %431 = vmatmul.f32.gmra.mxu0 %v270
  %v432 = vpop.f32.mrf.mxu0
  %v433 = vadd.f32 0.0, %v432
  %434 = vmatmul.f32.gmra.mxu0 %v273
  %v435 = vpop.f32.mrf.mxu0
  %v436 = vadd.f32 0.0, %v435
  %437 = vmatmul.f32.gmra.mxu0 %v276
  %v438 = vpop.f32.mrf.mxu0
  %v439 = vadd.f32 0.0, %v438
  %440 = vmatmul.f32.gmra.mxu0 %v279
  %v441 = vpop.f32.mrf.mxu0
  %v442 = vadd.f32 0.0, %v441
  %443 = vmatmul.f32.gmra.mxu0 %v282
  %v444 = vpop.f32.mrf.mxu0
  %v445 = vadd.f32 0.0, %v444
  %446 = vmatmul.f32.gmra.mxu0 %v285
  %v447 = vpop.f32.mrf.mxu0
  %v448 = vadd.f32 0.0, %v447
  %449 = vmatmul.f32.gmra.mxu0 %v288
  %v450 = vpop.f32.mrf.mxu0
  %v451 = vadd.f32 0.0, %v450
  %452 = vmatmul.f32.gmra.mxu0 %v291
  %v453 = vpop.f32.mrf.mxu0
  %v454 = vadd.f32 0.0, %v453
  %455 = vmatmul.f32.gmra.mxu0 %v294
  %v456 = vpop.f32.mrf.mxu0
  %v457 = vadd.f32 0.0, %v456
  %458 = vmatmul.f32.gmra.mxu0 %v297
  %v459 = vpop.f32.mrf.mxu0
  %v460 = vadd.f32 0.0, %v459
  %461 = vmatmul.f32.gmra.mxu0 %v300
  %v462 = vpop.f32.mrf.mxu0
  %v463 = vadd.f32 0.0, %v462
  %464 = vmatmul.f32.gmra.mxu0 %v303
  %v465 = vpop.f32.mrf.mxu0
  %v466 = vadd.f32 0.0, %v465
  %467 = vmatmul.f32.gmra.mxu0 %v306
  %v468 = vpop.f32.mrf.mxu0
  %v469 = vadd.f32 0.0, %v468
  %470 = vmatmul.f32.gmra.mxu0 %v309
  %v471 = vpop.f32.mrf.mxu0
  %v472 = vadd.f32 0.0, %v471
  %473 = vmatmul.f32.gmra.mxu0 %v312
  %v474 = vpop.f32.mrf.mxu0
  %v475 = vadd.f32 0.0, %v474
  %476 = vdwg.mxu0
  %v477 = vadd.f32 %v217, %v365
  %v478 = vadd.f32 %v218, %v430
  %v479 = vadd.f32 %v219, %v368
  %v480 = vadd.f32 %v220, %v433
  %v481 = vadd.f32 %v221, %v371
  %v482 = vadd.f32 %v222, %v436
  %v483 = vadd.f32 %v223, %v374
  %v484 = vadd.f32 %v224, %v439
  %v485 = vadd.f32 %v225, %v377
  %v486 = vadd.f32 %v226, %v442
  %v487 = vadd.f32 %v227, %v380
  %v488 = vadd.f32 %v228, %v445
  %v489 = vadd.f32 %v229, %v383
  %v490 = vadd.f32 %v230, %v448
  %v491 = vadd.f32 %v231, %v386
  %v492 = vadd.f32 %v232, %v451
  %v493 = vadd.f32 %v233, %v389
  %v494 = vadd.f32 %v234, %v454
  %v495 = vadd.f32 %v235, %v392
  %v496 = vadd.f32 %v236, %v457
  %v497 = vadd.f32 %v237, %v395
  %v498 = vadd.f32 %v238, %v460
  %v499 = vadd.f32 %v239, %v398
  %v500 = vadd.f32 %v240, %v463
  %v501 = vadd.f32 %v241, %v401
  %v502 = vadd.f32 %v242, %v466
  %v503 = vadd.f32 %v243, %v404
  %v504 = vadd.f32 %v244, %v469
  %v505 = vadd.f32 %v245, %v407
  %v506 = vadd.f32 %v246, %v472
  %v507 = vadd.f32 %v247, %v410
  %v508 = vadd.f32 %v248, %v475
  %509 = vmatpush.msra.mxu0 %v312
  %510 = vmatpush.msra.mxu0 %v309
  %511 = vmatpush.msra.mxu0 %v306
  %512 = vmatpush.msra.mxu0 %v303
  %513 = vmatpush.msra.mxu0 %v300
  %514 = vmatpush.msra.mxu0 %v297
  %515 = vmatpush.msra.mxu0 %v294
  %516 = vmatpush.msra.mxu0 %v291
  %517 = vmatpush.msra.mxu0 %v288
  %518 = vmatpush.msra.mxu0 %v285
  %519 = vmatpush.msra.mxu0 %v282
  %520 = vmatpush.msra.mxu0 %v279
  %521 = vmatpush.msra.mxu0 %v276
  %522 = vmatpush.msra.mxu0 %v273
  %523 = vmatpush.msra.mxu0 %v270
  %524 = vmatpush.msra.mxu0 %v267
  %525 = vmatmul.f32.gmra.mxu0 %v17
  %v526 = vpop.f32.mrf.mxu0
  %v527 = vadd.f32 0.0, %v526
  %528 = vmatmul.f32.gmra.mxu0 %v18
  %v529 = vpop.f32.mrf.mxu0
  %v530 = vadd.f32 0.0, %v529
  %531 = vmatmul.f32.gmra.mxu0 %v19
  %v532 = vpop.f32.mrf.mxu0
  %v533 = vadd.f32 0.0, %v532
  %534 = vmatmul.f32.gmra.mxu0 %v20
  %v535 = vpop.f32.mrf.mxu0
  %v536 = vadd.f32 0.0, %v535
  %537 = vmatmul.f32.gmra.mxu0 %v21
  %v538 = vpop.f32.mrf.mxu0
  %v539 = vadd.f32 0.0, %v538
  %540 = vmatmul.f32.gmra.mxu0 %v22
  %v541 = vpop.f32.mrf.mxu0
  %v542 = vadd.f32 0.0, %v541
  %543 = vmatmul.f32.gmra.mxu0 %v23
  %v544 = vpop.f32.mrf.mxu0
  %v545 = vadd.f32 0.0, %v544
  %546 = vmatmul.f32.gmra.mxu0 %v24
  %v547 = vpop.f32.mrf.mxu0
  %v548 = vadd.f32 0.0, %v547
  %549 = vmatmul.f32.gmra.mxu0 %v25
  %v550 = vpop.f32.mrf.mxu0
  %v551 = vadd.f32 0.0, %v550
  %552 = vmatmul.f32.gmra.mxu0 %v26
  %v553 = vpop.f32.mrf.mxu0
  %v554 = vadd.f32 0.0, %v553
  %555 = vmatmul.f32.gmra.mxu0 %v27
  %v556 = vpop.f32.mrf.mxu0
  %v557 = vadd.f32 0.0, %v556
  %558 = vmatmul.f32.gmra.mxu0 %v28
  %v559 = vpop.f32.mrf.mxu0
  %v560 = vadd.f32 0.0, %v559
  %561 = vmatmul.f32.gmra.mxu0 %v29
  %v562 = vpop.f32.mrf.mxu0
  %v563 = vadd.f32 0.0, %v562
  %564 = vmatmul.f32.gmra.mxu0 %v30
  %v565 = vpop.f32.mrf.mxu0
  %v566 = vadd.f32 0.0, %v565
  %567 = vmatmul.f32.gmra.mxu0 %v31
  %v568 = vpop.f32.mrf.mxu0
  %v569 = vadd.f32 0.0, %v568
  %570 = vmatmul.f32.gmra.mxu0 %v32
  %v571 = vpop.f32.mrf.mxu0
  %v572 = vadd.f32 0.0, %v571
  %573 = vdwg.mxu0
  %v574 = vmul.f32 %v527, 2.0
  %v575 = vmul.f32 %v530, 2.0
  %v576 = vmul.f32 %v533, 2.0
  %v577 = vmul.f32 %v536, 2.0
  %v578 = vmul.f32 %v539, 2.0
  %v579 = vmul.f32 %v542, 2.0
  %v580 = vmul.f32 %v545, 2.0
  %v581 = vmul.f32 %v548, 2.0
  %v582 = vmul.f32 %v551, 2.0
  %v583 = vmul.f32 %v554, 2.0
  %v584 = vmul.f32 %v557, 2.0
  %v585 = vmul.f32 %v560, 2.0
  %v586 = vmul.f32 %v563, 2.0
  %v587 = vmul.f32 %v566, 2.0
  %v588 = vmul.f32 %v569, 2.0
  %v589 = vmul.f32 %v572, 2.0
  %v590 = vsub.f32 %v574, %v33
  %v591 = vsub.f32 %v575, %v34
  %v592 = vsub.f32 %v576, %v35
  %v593 = vsub.f32 %v577, %v36
  %v594 = vsub.f32 %v578, %v37
  %v595 = vsub.f32 %v579, %v38
  %v596 = vsub.f32 %v580, %v39
  %v597 = vsub.f32 %v581, %v40
  %v598 = vsub.f32 %v582, %v41
  %v599 = vsub.f32 %v583, %v42
  %v600 = vsub.f32 %v584, %v43
  %v601 = vsub.f32 %v585, %v44
  %v602 = vsub.f32 %v586, %v45
  %v603 = vsub.f32 %v587, %v46
  %v604 = vsub.f32 %v588, %v47
  %v605 = vsub.f32 %v589, %v48
  %s606 = scalar_lea.vmem %s2, 512
  %v607 = vld [vmem:[%s606] sm:$0xff]
  %v608 = vld [vmem:[%s606 + $0x8] sm:$0xff]
  %v609 = vld [vmem:[%s606 + $0x10] sm:$0xff]
  %v610 = vld [vmem:[%s606 + $0x18] sm:$0xff]
  %v611 = vld [vmem:[%s606 + $0x20] sm:$0xff]
  %v612 = vld [vmem:[%s606 + $0x28] sm:$0xff]
  %v613 = vld [vmem:[%s606 + $0x30] sm:$0xff]
  %v614 = vld [vmem:[%s606 + $0x38] sm:$0xff]
  %v615 = vld [vmem:[%s606 + $0x40] sm:$0xff]
  %v616 = vld [vmem:[%s606 + $0x48] sm:$0xff]
  %v617 = vld [vmem:[%s606 + $0x50] sm:$0xff]
  %v618 = vld [vmem:[%s606 + $0x58] sm:$0xff]
  %v619 = vld [vmem:[%s606 + $0x60] sm:$0xff]
  %v620 = vld [vmem:[%s606 + $0x68] sm:$0xff]
  %v621 = vld [vmem:[%s606 + $0x70] sm:$0xff]
  %v622 = vld [vmem:[%s606 + $0x78] sm:$0xff]
  %v623 = vld [vmem:[%s606 + $0x80] sm:$0xff]
  %v624 = vld [vmem:[%s606 + $0x88] sm:$0xff]
  %v625 = vld [vmem:[%s606 + $0x90] sm:$0xff]
  %v626 = vld [vmem:[%s606 + $0x98] sm:$0xff]
  %v627 = vld [vmem:[%s606 + $0xa0] sm:$0xff]
  %v628 = vld [vmem:[%s606 + $0xa8] sm:$0xff]
  %v629 = vld [vmem:[%s606 + $0xb0] sm:$0xff]
  %v630 = vld [vmem:[%s606 + $0xb8] sm:$0xff]
  %v631 = vld [vmem:[%s606 + $0xc0] sm:$0xff]
  %v632 = vld [vmem:[%s606 + $0xc8] sm:$0xff]
  %v633 = vld [vmem:[%s606 + $0xd0] sm:$0xff]
  %v634 = vld [vmem:[%s606 + $0xd8] sm:$0xff]
  %v635 = vld [vmem:[%s606 + $0xe0] sm:$0xff]
  %v636 = vld [vmem:[%s606 + $0xe8] sm:$0xff]
  %v637 = vld [vmem:[%s606 + $0xf0] sm:$0xff]
  %v638 = vld [vmem:[%s606 + $0xf8] sm:$0xff]
  %639 = vmatpush.msra.mxu0 %v637
  %640 = vmatpush.msra.mxu0 %v635
  %641 = vmatpush.msra.mxu0 %v633
  %642 = vmatpush.msra.mxu0 %v631
  %643 = vmatpush.msra.mxu0 %v629
  %644 = vmatpush.msra.mxu0 %v627
  %645 = vmatpush.msra.mxu0 %v625
  %646 = vmatpush.msra.mxu0 %v623
  %647 = vmatpush.msra.mxu0 %v621
  %648 = vmatpush.msra.mxu0 %v619
  %649 = vmatpush.msra.mxu0 %v617
  %650 = vmatpush.msra.mxu0 %v615
  %651 = vmatpush.msra.mxu0 %v613
  %652 = vmatpush.msra.mxu0 %v611
  %653 = vmatpush.msra.mxu0 %v609
  %654 = vmatpush.msra.mxu0 %v607
  %655 = vmatmul.f32.gmra.mxu0 %v590
  %v656 = vpop.f32.mrf.mxu0
  %v657 = vadd.f32 0.0, %v656
  %658 = vmatmul.f32.gmra.mxu0 %v591
  %v659 = vpop.f32.mrf.mxu0
  %v660 = vadd.f32 0.0, %v659
  %661 = vmatmul.f32.gmra.mxu0 %v592
  %v662 = vpop.f32.mrf.mxu0
  %v663 = vadd.f32 0.0, %v662
  %664 = vmatmul.f32.gmra.mxu0 %v593
  %v665 = vpop.f32.mrf.mxu0
  %v666 = vadd.f32 0.0, %v665
  %667 = vmatmul.f32.gmra.mxu0 %v594
  %v668 = vpop.f32.mrf.mxu0
  %v669 = vadd.f32 0.0, %v668
  %670 = vmatmul.f32.gmra.mxu0 %v595
  %v671 = vpop.f32.mrf.mxu0
  %v672 = vadd.f32 0.0, %v671
  %673 = vmatmul.f32.gmra.mxu0 %v596
  %v674 = vpop.f32.mrf.mxu0
  %v675 = vadd.f32 0.0, %v674
  %676 = vmatmul.f32.gmra.mxu0 %v597
  %v677 = vpop.f32.mrf.mxu0
  %v678 = vadd.f32 0.0, %v677
  %679 = vmatmul.f32.gmra.mxu0 %v598
  %v680 = vpop.f32.mrf.mxu0
  %v681 = vadd.f32 0.0, %v680
  %682 = vmatmul.f32.gmra.mxu0 %v599
  %v683 = vpop.f32.mrf.mxu0
  %v684 = vadd.f32 0.0, %v683
  %685 = vmatmul.f32.gmra.mxu0 %v600
  %v686 = vpop.f32.mrf.mxu0
  %v687 = vadd.f32 0.0, %v686
  %688 = vmatmul.f32.gmra.mxu0 %v601
  %v689 = vpop.f32.mrf.mxu0
  %v690 = vadd.f32 0.0, %v689
  %691 = vmatmul.f32.gmra.mxu0 %v602
  %v692 = vpop.f32.mrf.mxu0
  %v693 = vadd.f32 0.0, %v692
  %694 = vmatmul.f32.gmra.mxu0 %v603
  %v695 = vpop.f32.mrf.mxu0
  %v696 = vadd.f32 0.0, %v695
  %697 = vmatmul.f32.gmra.mxu0 %v604
  %v698 = vpop.f32.mrf.mxu0
  %v699 = vadd.f32 0.0, %v698
  %700 = vmatmul.f32.gmra.mxu0 %v605
  %v701 = vpop.f32.mrf.mxu0
  %v702 = vadd.f32 0.0, %v701
  %703 = vdwg.mxu0
  %704 = vmatpush.msra.mxu0 %v638
  %705 = vmatpush.msra.mxu0 %v636
  %706 = vmatpush.msra.mxu0 %v634
  %707 = vmatpush.msra.mxu0 %v632
  %708 = vmatpush.msra.mxu0 %v630
  %709 = vmatpush.msra.mxu0 %v628
  %710 = vmatpush.msra.mxu0 %v626
  %711 = vmatpush.msra.mxu0 %v624
  %712 = vmatpush.msra.mxu0 %v622
  %713 = vmatpush.msra.mxu0 %v620
  %714 = vmatpush.msra.mxu0 %v618
  %715 = vmatpush.msra.mxu0 %v616
  %716 = vmatpush.msra.mxu0 %v614
  %717 = vmatpush.msra.mxu0 %v612
  %718 = vmatpush.msra.mxu0 %v610
  %719 = vmatpush.msra.mxu0 %v608
  %720 = vmatmul.f32.gmra.mxu0 %v590
  %v721 = vpop.f32.mrf.mxu0
  %v722 = vadd.f32 0.0, %v721
  %723 = vmatmul.f32.gmra.mxu0 %v591
  %v724 = vpop.f32.mrf.mxu0
  %v725 = vadd.f32 0.0, %v724
  %726 = vmatmul.f32.gmra.mxu0 %v592
  %v727 = vpop.f32.mrf.mxu0
  %v728 = vadd.f32 0.0, %v727
  %729 = vmatmul.f32.gmra.mxu0 %v593
  %v730 = vpop.f32.mrf.mxu0
  %v731 = vadd.f32 0.0, %v730
  %732 = vmatmul.f32.gmra.mxu0 %v594
  %v733 = vpop.f32.mrf.mxu0
  %v734 = vadd.f32 0.0, %v733
  %735 = vmatmul.f32.gmra.mxu0 %v595
  %v736 = vpop.f32.mrf.mxu0
  %v737 = vadd.f32 0.0, %v736
  %738 = vmatmul.f32.gmra.mxu0 %v596
  %v739 = vpop.f32.mrf.mxu0
  %v740 = vadd.f32 0.0, %v739
  %741 = vmatmul.f32.gmra.mxu0 %v597
  %v742 = vpop.f32.mrf.mxu0
  %v743 = vadd.f32 0.0, %v742
  %744 = vmatmul.f32.gmra.mxu0 %v598
  %v745 = vpop.f32.mrf.mxu0
  %v746 = vadd.f32 0.0, %v745
  %747 = vmatmul.f32.gmra.mxu0 %v599
  %v748 = vpop.f32.mrf.mxu0
  %v749 = vadd.f32 0.0, %v748
  %750 = vmatmul.f32.gmra.mxu0 %v600
  %v751 = vpop.f32.mrf.mxu0
  %v752 = vadd.f32 0.0, %v751
  %753 = vmatmul.f32.gmra.mxu0 %v601
  %v754 = vpop.f32.mrf.mxu0
  %v755 = vadd.f32 0.0, %v754
  %756 = vmatmul.f32.gmra.mxu0 %v602
  %v757 = vpop.f32.mrf.mxu0
  %v758 = vadd.f32 0.0, %v757
  %759 = vmatmul.f32.gmra.mxu0 %v603
  %v760 = vpop.f32.mrf.mxu0
  %v761 = vadd.f32 0.0, %v760
  %762 = vmatmul.f32.gmra.mxu0 %v604
  %v763 = vpop.f32.mrf.mxu0
  %v764 = vadd.f32 0.0, %v763
  %765 = vmatmul.f32.gmra.mxu0 %v605
  %v766 = vpop.f32.mrf.mxu0
  %v767 = vadd.f32 0.0, %v766
  %768 = vdwg.mxu0
  %v769 = vadd.f32 %v477, %v657
  %v770 = vadd.f32 %v478, %v722
  %v771 = vadd.f32 %v479, %v660
  %v772 = vadd.f32 %v480, %v725
  %v773 = vadd.f32 %v481, %v663
  %v774 = vadd.f32 %v482, %v728
  %v775 = vadd.f32 %v483, %v666
  %v776 = vadd.f32 %v484, %v731
  %v777 = vadd.f32 %v485, %v669
  %v778 = vadd.f32 %v486, %v734
  %v779 = vadd.f32 %v487, %v672
  %v780 = vadd.f32 %v488, %v737
  %v781 = vadd.f32 %v489, %v675
  %v782 = vadd.f32 %v490, %v740
  %v783 = vadd.f32 %v491, %v678
  %v784 = vadd.f32 %v492, %v743
  %v785 = vadd.f32 %v493, %v681
  %v786 = vadd.f32 %v494, %v746
  %v787 = vadd.f32 %v495, %v684
  %v788 = vadd.f32 %v496, %v749
  %v789 = vadd.f32 %v497, %v687
  %v790 = vadd.f32 %v498, %v752
  %v791 = vadd.f32 %v499, %v690
  %v792 = vadd.f32 %v500, %v755
  %v793 = vadd.f32 %v501, %v693
  %v794 = vadd.f32 %v502, %v758
  %v795 = vadd.f32 %v503, %v696
  %v796 = vadd.f32 %v504, %v761
  %v797 = vadd.f32 %v505, %v699
  %v798 = vadd.f32 %v506, %v764
  %v799 = vadd.f32 %v507, %v702
  %v800 = vadd.f32 %v508, %v767
  %801 = vmatpush.msra.mxu0 %v605
  %802 = vmatpush.msra.mxu0 %v604
  %803 = vmatpush.msra.mxu0 %v603
  %804 = vmatpush.msra.mxu0 %v602
  %805 = vmatpush.msra.mxu0 %v601
  %806 = vmatpush.msra.mxu0 %v600
  %807 = vmatpush.msra.mxu0 %v599
  %808 = vmatpush.msra.mxu0 %v598
  %809 = vmatpush.msra.mxu0 %v597
  %810 = vmatpush.msra.mxu0 %v596
  %811 = vmatpush.msra.mxu0 %v595
  %812 = vmatpush.msra.mxu0 %v594
  %813 = vmatpush.msra.mxu0 %v593
  %814 = vmatpush.msra.mxu0 %v592
  %815 = vmatpush.msra.mxu0 %v591
  %816 = vmatpush.msra.mxu0 %v590
  %817 = vmatmul.f32.gmra.mxu0 %v17
  %v818 = vpop.f32.mrf.mxu0
  %v819 = vadd.f32 0.0, %v818
  %820 = vmatmul.f32.gmra.mxu0 %v18
  %v821 = vpop.f32.mrf.mxu0
  %v822 = vadd.f32 0.0, %v821
  %823 = vmatmul.f32.gmra.mxu0 %v19
  %v824 = vpop.f32.mrf.mxu0
  %v825 = vadd.f32 0.0, %v824
  %826 = vmatmul.f32.gmra.mxu0 %v20
  %v827 = vpop.f32.mrf.mxu0
  %v828 = vadd.f32 0.0, %v827
  %829 = vmatmul.f32.gmra.mxu0 %v21
  %v830 = vpop.f32.mrf.mxu0
  %v831 = vadd.f32 0.0, %v830
  %832 = vmatmul.f32.gmra.mxu0 %v22
  %v833 = vpop.f32.mrf.mxu0
  %v834 = vadd.f32 0.0, %v833
  %835 = vmatmul.f32.gmra.mxu0 %v23
  %v836 = vpop.f32.mrf.mxu0
  %v837 = vadd.f32 0.0, %v836
  %838 = vmatmul.f32.gmra.mxu0 %v24
  %v839 = vpop.f32.mrf.mxu0
  %v840 = vadd.f32 0.0, %v839
  %841 = vmatmul.f32.gmra.mxu0 %v25
  %v842 = vpop.f32.mrf.mxu0
  %v843 = vadd.f32 0.0, %v842
  %844 = vmatmul.f32.gmra.mxu0 %v26
  %v845 = vpop.f32.mrf.mxu0
  %v846 = vadd.f32 0.0, %v845
  %847 = vmatmul.f32.gmra.mxu0 %v27
  %v848 = vpop.f32.mrf.mxu0
  %v849 = vadd.f32 0.0, %v848
  %850 = vmatmul.f32.gmra.mxu0 %v28
  %v851 = vpop.f32.mrf.mxu0
  %v852 = vadd.f32 0.0, %v851
  %853 = vmatmul.f32.gmra.mxu0 %v29
  %v854 = vpop.f32.mrf.mxu0
  %v855 = vadd.f32 0.0, %v854
  %856 = vmatmul.f32.gmra.mxu0 %v30
  %v857 = vpop.f32.mrf.mxu0
  %v858 = vadd.f32 0.0, %v857
  %859 = vmatmul.f32.gmra.mxu0 %v31
  %v860 = vpop.f32.mrf.mxu0
  %v861 = vadd.f32 0.0, %v860
  %862 = vmatmul.f32.gmra.mxu0 %v32
  %v863 = vpop.f32.mrf.mxu0
  %v864 = vadd.f32 0.0, %v863
  %865 = vdwg.mxu0
  %v866 = vmul.f32 %v819, 2.0
  %v867 = vmul.f32 %v822, 2.0
  %v868 = vmul.f32 %v825, 2.0
  %v869 = vmul.f32 %v828, 2.0
  %v870 = vmul.f32 %v831, 2.0
  %v871 = vmul.f32 %v834, 2.0
  %v872 = vmul.f32 %v837, 2.0
  %v873 = vmul.f32 %v840, 2.0
  %v874 = vmul.f32 %v843, 2.0
  %v875 = vmul.f32 %v846, 2.0
  %v876 = vmul.f32 %v849, 2.0
  %v877 = vmul.f32 %v852, 2.0
  %v878 = vmul.f32 %v855, 2.0
  %v879 = vmul.f32 %v858, 2.0
  %v880 = vmul.f32 %v861, 2.0
  %v881 = vmul.f32 %v864, 2.0
  %v882 = vsub.f32 %v866, %v267
  %v883 = vsub.f32 %v867, %v270
  %v884 = vsub.f32 %v868, %v273
  %v885 = vsub.f32 %v869, %v276
  %v886 = vsub.f32 %v870, %v279
  %v887 = vsub.f32 %v871, %v282
  %v888 = vsub.f32 %v872, %v285
  %v889 = vsub.f32 %v873, %v288
  %v890 = vsub.f32 %v874, %v291
  %v891 = vsub.f32 %v875, %v294
  %v892 = vsub.f32 %v876, %v297
  %v893 = vsub.f32 %v877, %v300
  %v894 = vsub.f32 %v878, %v303
  %v895 = vsub.f32 %v879, %v306
  %v896 = vsub.f32 %v880, %v309
  %v897 = vsub.f32 %v881, %v312
  %s898 = scalar_lea.vmem %s2, 768
  %v899 = vld [vmem:[%s898] sm:$0xff]
  %v900 = vld [vmem:[%s898 + $0x8] sm:$0xff]
  %v901 = vld [vmem:[%s898 + $0x10] sm:$0xff]
  %v902 = vld [vmem:[%s898 + $0x18] sm:$0xff]
  %v903 = vld [vmem:[%s898 + $0x20] sm:$0xff]
  %v904 = vld [vmem:[%s898 + $0x28] sm:$0xff]
  %v905 = vld [vmem:[%s898 + $0x30] sm:$0xff]
  %v906 = vld [vmem:[%s898 + $0x38] sm:$0xff]
  %v907 = vld [vmem:[%s898 + $0x40] sm:$0xff]
  %v908 = vld [vmem:[%s898 + $0x48] sm:$0xff]
  %v909 = vld [vmem:[%s898 + $0x50] sm:$0xff]
  %v910 = vld [vmem:[%s898 + $0x58] sm:$0xff]
  %v911 = vld [vmem:[%s898 + $0x60] sm:$0xff]
  %v912 = vld [vmem:[%s898 + $0x68] sm:$0xff]
  %v913 = vld [vmem:[%s898 + $0x70] sm:$0xff]
  %v914 = vld [vmem:[%s898 + $0x78] sm:$0xff]
  %v915 = vld [vmem:[%s898 + $0x80] sm:$0xff]
  %v916 = vld [vmem:[%s898 + $0x88] sm:$0xff]
  %v917 = vld [vmem:[%s898 + $0x90] sm:$0xff]
  %v918 = vld [vmem:[%s898 + $0x98] sm:$0xff]
  %v919 = vld [vmem:[%s898 + $0xa0] sm:$0xff]
  %v920 = vld [vmem:[%s898 + $0xa8] sm:$0xff]
  %v921 = vld [vmem:[%s898 + $0xb0] sm:$0xff]
  %v922 = vld [vmem:[%s898 + $0xb8] sm:$0xff]
  %v923 = vld [vmem:[%s898 + $0xc0] sm:$0xff]
  %v924 = vld [vmem:[%s898 + $0xc8] sm:$0xff]
  %v925 = vld [vmem:[%s898 + $0xd0] sm:$0xff]
  %v926 = vld [vmem:[%s898 + $0xd8] sm:$0xff]
  %v927 = vld [vmem:[%s898 + $0xe0] sm:$0xff]
  %v928 = vld [vmem:[%s898 + $0xe8] sm:$0xff]
  %v929 = vld [vmem:[%s898 + $0xf0] sm:$0xff]
  %v930 = vld [vmem:[%s898 + $0xf8] sm:$0xff]
  %931 = vmatpush.msra.mxu0 %v929
  %932 = vmatpush.msra.mxu0 %v927
  %933 = vmatpush.msra.mxu0 %v925
  %934 = vmatpush.msra.mxu0 %v923
  %935 = vmatpush.msra.mxu0 %v921
  %936 = vmatpush.msra.mxu0 %v919
  %937 = vmatpush.msra.mxu0 %v917
  %938 = vmatpush.msra.mxu0 %v915
  %939 = vmatpush.msra.mxu0 %v913
  %940 = vmatpush.msra.mxu0 %v911
  %941 = vmatpush.msra.mxu0 %v909
  %942 = vmatpush.msra.mxu0 %v907
  %943 = vmatpush.msra.mxu0 %v905
  %944 = vmatpush.msra.mxu0 %v903
  %945 = vmatpush.msra.mxu0 %v901
  %946 = vmatpush.msra.mxu0 %v899
  %947 = vmatmul.f32.gmra.mxu0 %v882
  %v948 = vpop.f32.mrf.mxu0
  %v949 = vadd.f32 0.0, %v948
  %950 = vmatmul.f32.gmra.mxu0 %v883
  %v951 = vpop.f32.mrf.mxu0
  %v952 = vadd.f32 0.0, %v951
  %953 = vmatmul.f32.gmra.mxu0 %v884
  %v954 = vpop.f32.mrf.mxu0
  %v955 = vadd.f32 0.0, %v954
  %956 = vmatmul.f32.gmra.mxu0 %v885
  %v957 = vpop.f32.mrf.mxu0
  %v958 = vadd.f32 0.0, %v957
  %959 = vmatmul.f32.gmra.mxu0 %v886
  %v960 = vpop.f32.mrf.mxu0
  %v961 = vadd.f32 0.0, %v960
  %962 = vmatmul.f32.gmra.mxu0 %v887
  %v963 = vpop.f32.mrf.mxu0
  %v964 = vadd.f32 0.0, %v963
  %965 = vmatmul.f32.gmra.mxu0 %v888
  %v966 = vpop.f32.mrf.mxu0
  %v967 = vadd.f32 0.0, %v966
  %968 = vmatmul.f32.gmra.mxu0 %v889
  %v969 = vpop.f32.mrf.mxu0
  %v970 = vadd.f32 0.0, %v969
  %971 = vmatmul.f32.gmra.mxu0 %v890
  %v972 = vpop.f32.mrf.mxu0
  %v973 = vadd.f32 0.0, %v972
  %974 = vmatmul.f32.gmra.mxu0 %v891
  %v975 = vpop.f32.mrf.mxu0
  %v976 = vadd.f32 0.0, %v975
  %977 = vmatmul.f32.gmra.mxu0 %v892
  %v978 = vpop.f32.mrf.mxu0
  %v979 = vadd.f32 0.0, %v978
  %980 = vmatmul.f32.gmra.mxu0 %v893
  %v981 = vpop.f32.mrf.mxu0
  %v982 = vadd.f32 0.0, %v981
  %983 = vmatmul.f32.gmra.mxu0 %v894
  %v984 = vpop.f32.mrf.mxu0
  %v985 = vadd.f32 0.0, %v984
  %986 = vmatmul.f32.gmra.mxu0 %v895
  %v987 = vpop.f32.mrf.mxu0
  %v988 = vadd.f32 0.0, %v987
  %989 = vmatmul.f32.gmra.mxu0 %v896
  %v990 = vpop.f32.mrf.mxu0
  %v991 = vadd.f32 0.0, %v990
  %992 = vmatmul.f32.gmra.mxu0 %v897
  %v993 = vpop.f32.mrf.mxu0
  %v994 = vadd.f32 0.0, %v993
  %995 = vdwg.mxu0
  %996 = vmatpush.msra.mxu0 %v930
  %997 = vmatpush.msra.mxu0 %v928
  %998 = vmatpush.msra.mxu0 %v926
  %999 = vmatpush.msra.mxu0 %v924
  %1000 = vmatpush.msra.mxu0 %v922
  %1001 = vmatpush.msra.mxu0 %v920
  %1002 = vmatpush.msra.mxu0 %v918
  %1003 = vmatpush.msra.mxu0 %v916
  %1004 = vmatpush.msra.mxu0 %v914
  %1005 = vmatpush.msra.mxu0 %v912
  %1006 = vmatpush.msra.mxu0 %v910
  %1007 = vmatpush.msra.mxu0 %v908
  %1008 = vmatpush.msra.mxu0 %v906
  %1009 = vmatpush.msra.mxu0 %v904
  %1010 = vmatpush.msra.mxu0 %v902
  %1011 = vmatpush.msra.mxu0 %v900
  %1012 = vmatmul.f32.gmra.mxu0 %v882
  %v1013 = vpop.f32.mrf.mxu0
  %v1014 = vadd.f32 0.0, %v1013
  %1015 = vmatmul.f32.gmra.mxu0 %v883
  %v1016 = vpop.f32.mrf.mxu0
  %v1017 = vadd.f32 0.0, %v1016
  %1018 = vmatmul.f32.gmra.mxu0 %v884
  %v1019 = vpop.f32.mrf.mxu0
  %v1020 = vadd.f32 0.0, %v1019
  %1021 = vmatmul.f32.gmra.mxu0 %v885
  %v1022 = vpop.f32.mrf.mxu0
  %v1023 = vadd.f32 0.0, %v1022
  %1024 = vmatmul.f32.gmra.mxu0 %v886
  %v1025 = vpop.f32.mrf.mxu0
  %v1026 = vadd.f32 0.0, %v1025
  %1027 = vmatmul.f32.gmra.mxu0 %v887
  %v1028 = vpop.f32.mrf.mxu0
  %v1029 = vadd.f32 0.0, %v1028
  %1030 = vmatmul.f32.gmra.mxu0 %v888
  %v1031 = vpop.f32.mrf.mxu0
  %v1032 = vadd.f32 0.0, %v1031
  %1033 = vmatmul.f32.gmra.mxu0 %v889
  %v1034 = vpop.f32.mrf.mxu0
  %v1035 = vadd.f32 0.0, %v1034
  %1036 = vmatmul.f32.gmra.mxu0 %v890
  %v1037 = vpop.f32.mrf.mxu0
  %v1038 = vadd.f32 0.0, %v1037
  %1039 = vmatmul.f32.gmra.mxu0 %v891
  %v1040 = vpop.f32.mrf.mxu0
  %v1041 = vadd.f32 0.0, %v1040
  %1042 = vmatmul.f32.gmra.mxu0 %v892
  %v1043 = vpop.f32.mrf.mxu0
  %v1044 = vadd.f32 0.0, %v1043
  %1045 = vmatmul.f32.gmra.mxu0 %v893
  %v1046 = vpop.f32.mrf.mxu0
  %v1047 = vadd.f32 0.0, %v1046
  %1048 = vmatmul.f32.gmra.mxu0 %v894
  %v1049 = vpop.f32.mrf.mxu0
  %v1050 = vadd.f32 0.0, %v1049
  %1051 = vmatmul.f32.gmra.mxu0 %v895
  %v1052 = vpop.f32.mrf.mxu0
  %v1053 = vadd.f32 0.0, %v1052
  %1054 = vmatmul.f32.gmra.mxu0 %v896
  %v1055 = vpop.f32.mrf.mxu0
  %v1056 = vadd.f32 0.0, %v1055
  %1057 = vmatmul.f32.gmra.mxu0 %v897
  %v1058 = vpop.f32.mrf.mxu0
  %v1059 = vadd.f32 0.0, %v1058
  %1060 = vdwg.mxu0
  %v1061 = vadd.f32 %v769, %v949
  %v1062 = vadd.f32 %v770, %v1014
  %v1063 = vadd.f32 %v771, %v952
  %v1064 = vadd.f32 %v772, %v1017
  %v1065 = vadd.f32 %v773, %v955
  %v1066 = vadd.f32 %v774, %v1020
  %v1067 = vadd.f32 %v775, %v958
  %v1068 = vadd.f32 %v776, %v1023
  %v1069 = vadd.f32 %v777, %v961
  %v1070 = vadd.f32 %v778, %v1026
  %v1071 = vadd.f32 %v779, %v964
  %v1072 = vadd.f32 %v780, %v1029
  %v1073 = vadd.f32 %v781, %v967
  %v1074 = vadd.f32 %v782, %v1032
  %v1075 = vadd.f32 %v783, %v970
  %v1076 = vadd.f32 %v784, %v1035
  %v1077 = vadd.f32 %v785, %v973
  %v1078 = vadd.f32 %v786, %v1038
  %v1079 = vadd.f32 %v787, %v976
  %v1080 = vadd.f32 %v788, %v1041
  %v1081 = vadd.f32 %v789, %v979
  %v1082 = vadd.f32 %v790, %v1044
  %v1083 = vadd.f32 %v791, %v982
  %v1084 = vadd.f32 %v792, %v1047
  %v1085 = vadd.f32 %v793, %v985
  %v1086 = vadd.f32 %v794, %v1050
  %v1087 = vadd.f32 %v795, %v988
  %v1088 = vadd.f32 %v796, %v1053
  %v1089 = vadd.f32 %v797, %v991
  %v1090 = vadd.f32 %v798, %v1056
  %v1091 = vadd.f32 %v799, %v994
  %v1092 = vadd.f32 %v800, %v1059
  %1093 = vst [vmem:[%s4] sm:$0xff] %v1061
  %1094 = vst [vmem:[%s4 + $0x8] sm:$0xff] %v1062
  %1095 = vst [vmem:[%s4 + $0x10] sm:$0xff] %v1063
  %1096 = vst [vmem:[%s4 + $0x18] sm:$0xff] %v1064
  %1097 = vst [vmem:[%s4 + $0x20] sm:$0xff] %v1065
  %1098 = vst [vmem:[%s4 + $0x28] sm:$0xff] %v1066
  %1099 = vst [vmem:[%s4 + $0x30] sm:$0xff] %v1067
  %1100 = vst [vmem:[%s4 + $0x38] sm:$0xff] %v1068
  %1101 = vst [vmem:[%s4 + $0x40] sm:$0xff] %v1069
  %1102 = vst [vmem:[%s4 + $0x48] sm:$0xff] %v1070
  %1103 = vst [vmem:[%s4 + $0x50] sm:$0xff] %v1071
  %1104 = vst [vmem:[%s4 + $0x58] sm:$0xff] %v1072
  %1105 = vst [vmem:[%s4 + $0x60] sm:$0xff] %v1073
  %1106 = vst [vmem:[%s4 + $0x68] sm:$0xff] %v1074
  %1107 = vst [vmem:[%s4 + $0x70] sm:$0xff] %v1075
  %1108 = vst [vmem:[%s4 + $0x78] sm:$0xff] %v1076
  %1109 = vst [vmem:[%s4 + $0x80] sm:$0xff] %v1077
  %1110 = vst [vmem:[%s4 + $0x88] sm:$0xff] %v1078
  %1111 = vst [vmem:[%s4 + $0x90] sm:$0xff] %v1079
  %1112 = vst [vmem:[%s4 + $0x98] sm:$0xff] %v1080
  %1113 = vst [vmem:[%s4 + $0xa0] sm:$0xff] %v1081
  %1114 = vst [vmem:[%s4 + $0xa8] sm:$0xff] %v1082
  %1115 = vst [vmem:[%s4 + $0xb0] sm:$0xff] %v1083
  %1116 = vst [vmem:[%s4 + $0xb8] sm:$0xff] %v1084
  %1117 = vst [vmem:[%s4 + $0xc0] sm:$0xff] %v1085
  %1118 = vst [vmem:[%s4 + $0xc8] sm:$0xff] %v1086
  %1119 = vst [vmem:[%s4 + $0xd0] sm:$0xff] %v1087
  %1120 = vst [vmem:[%s4 + $0xd8] sm:$0xff] %v1088
  %1121 = vst [vmem:[%s4 + $0xe0] sm:$0xff] %v1089
  %1122 = vst [vmem:[%s4 + $0xe8] sm:$0xff] %v1090
  %1123 = vst [vmem:[%s4 + $0xf0] sm:$0xff] %v1091
  %1124 = vst [vmem:[%s4 + $0xf8] sm:$0xff] %v1092
  // Predicated region
  $region18: #{chebconv_forward.1} parent=0 // pred_check
    _
  $region19: #{chebconv_forward.1} parent=0 // pred_check_branch
    %1126 = sbr.rel (0) target = $region21
  $region20: #{chebconv_forward.1} parent=0 // pred_region
    _
  $region21: #{chebconv_forward.1} parent=0 // pred_fallthru
    _
  // Predicated region
  $region22: #{chebconv_forward.1} parent=0 // pred_check
    _
  $region23: #{chebconv_forward.1} parent=0 // pred_check_branch
    %1128 = sbr.rel (0) target = $region25
  $region24: #{chebconv_forward.1} parent=0 // pred_region
    _
  $region25: #{chebconv_forward.1} parent=0 // pred_fallthru
    _

</llo_original>
